<compile_context>
chip_gen: v5e
topology: v5e:2x2
jax: 0.10.0
libtpu: 0.0.40
codegen_flags: <defaults>
</compile_context>

<pallas_src>
import functools

import jax
import jax.numpy as jnp
from jax import lax
from jax.experimental import pallas as pl
from jax.experimental.pallas import tpu as pltpu


def _ce_label_smooth_kernel(coef_tgt, coef_uni, batch, block_b, num_classes,
                            targets_ref, inputs_ref, out_ref):
    i = pl.program_id(0)

    x = inputs_ref[...].astype(jnp.float32)            # (TB, C)
    tb, c = x.shape
    labels = targets_ref[...]                          # (TB, 1) int32
    col = lax.broadcasted_iota(jnp.int32, (tb, c), 1)

    # Defensive lane mask if the class axis is not 128-aligned (no-op otherwise).
    if num_classes % 128 != 0:
        lane_valid = col < num_classes
        x = jnp.where(lane_valid, x, -jnp.inf)

    # Numerically stable log-softmax pieces (per-row lane reductions on the XLU,
    # exp on the EUP).
    m = jnp.max(x, axis=1, keepdims=True)               # (TB, 1)
    shifted = x - m
    lse = jnp.log(jnp.sum(jnp.exp(shifted), axis=1, keepdims=True))   # (TB, 1)

    # Target term: log_probs[b, t_b] = shifted[b, t_b] - lse_b
    tgt_shift = jnp.sum(jnp.where(col == labels, shifted, 0.0),
                        axis=1, keepdims=True)           # (TB, 1)
    tgt_logprob = tgt_shift - lse

    # Uniform term: sum_c log_probs[b, c] = sum_c shifted[b, c] - C * lse_b
    if num_classes % 128 != 0:
        shifted_sum = jnp.sum(jnp.where(lane_valid, shifted, 0.0),
                              axis=1, keepdims=True)
    else:
        shifted_sum = jnp.sum(shifted, axis=1, keepdims=True)
    sum_logprob = shifted_sum - float(num_classes) * lse  # (TB, 1)

    # Coefficients already fold in the minus sign and the 1/B mean.
    per_row = coef_tgt * tgt_logprob + coef_uni * sum_logprob          # (TB, 1)

    # Mask rows beyond the true batch on the last (padded) tile.
    if batch % block_b != 0:
        row = lax.broadcasted_iota(jnp.int32, (tb, 1), 0) + i * block_b
        per_row = jnp.where(row < batch, per_row, 0.0)

    partial = jnp.sum(per_row)
    # Lane/sublane-dense store of the per-tile partial (one unmasked vst).
    out_ref[...] = jnp.full(out_ref.shape, partial, dtype=out_ref.dtype)


def _choose_block_b(batch, num_classes, itemsize, target_buffer_bytes=6 << 20):
    """Pick a batch tile: sublane-aligned, ~6 MiB per logits buffer."""
    if batch <= 8:
        return batch                                   # single full block
    rows = max(8, target_buffer_bytes // max(1, num_classes * itemsize))
    tb = min(batch, rows)
    return max(8, (tb // 8) * 8)


def cross_entropy_label_smooth(inputs, targets, *, num_classes, epsilon=0.1,
                               block_b=None):
    """inputs: (B, C) float logits; targets: (B,) int labels -> scalar f32 loss."""
    B, C = inputs.shape
    assert C == num_classes

    if block_b is None:
        block_b = _choose_block_b(B, C, jnp.dtype(inputs.dtype).itemsize)
    num_tiles = pl.cdiv(B, block_b)

    # loss = sum_b [ -(1-eps)/B * log_p[b,t_b]  -  eps/(C*B) * sum_c log_p[b,c] ]
    coef_tgt = -(1.0 - epsilon) / B
    coef_uni = -(epsilon / C) / B

    targets2d = targets.astype(jnp.int32).reshape(B, 1)

    kernel = functools.partial(_ce_label_smooth_kernel,
                               coef_tgt, coef_uni, B, block_b, C)

    partials = pl.pallas_call(
        kernel,
        out_shape=jax.ShapeDtypeStruct((num_tiles, 8, 128), jnp.float32),
        grid=(num_tiles,),
        in_specs=[
            pl.BlockSpec((block_b, 1), lambda i: (i, 0)),   # labels  (TB, 1) int32
            pl.BlockSpec((block_b, C), lambda i: (i, 0)),   # logits  (TB, C)
        ],
        out_specs=pl.BlockSpec((1, 8, 128), lambda i: (i, 0, 0)),
        compiler_params=pltpu.CompilerParams(
            dimension_semantics=("parallel",),              # independent tiles -> megacore
            vmem_limit_bytes=32 * 1024 * 1024,
        ),
    )(targets2d, inputs)

    # Tiny final reduction over per-tile partials in the wrapper.
    return jnp.sum(partials[:, 0, 0])


def _reference(inputs, targets, num_classes, epsilon=0.1):
    log_probs = jax.nn.log_softmax(inputs.astype(jnp.float32), axis=1)
    onehot = jax.nn.one_hot(targets, num_classes, dtype=jnp.float32)
    smooth = (1.0 - epsilon) * onehot + epsilon / num_classes
    return (-smooth * log_probs).mean(0).sum()


if __name__ == "__main__":
    key = jax.random.PRNGKey(0)

    def check(B, C, eps, block_b=None):
        k1, k2 = jax.random.split(jax.random.fold_in(key, B * 1000 + C))
        x = jax.random.normal(k1, (B, C), dtype=jnp.float32)
        t = jax.random.randint(k2, (B,), 0, C, dtype=jnp.int32)
        loss = cross_entropy_label_smooth(x, t, num_classes=C, epsilon=eps,
                                          block_b=block_b)
        loss = jax.block_until_ready(loss)
        ref = _reference(x, t, C, eps)
        assert jnp.allclose(loss, ref, rtol=1e-5, atol=1e-5), (B, C, loss, ref)

    check(8, 128, 0.1)                 # single tile, lane-aligned classes
    check(20, 128, 0.1, block_b=8)     # multi-tile grid + partial last batch tile
    check(8, 96, 0.1)                  # class dim not a multiple of 128

    print("KERNEL_OK")
</pallas_src>

<mosaic_0001>
module attributes {stable_mosaic.version = 11 : i64} {
  func.func @_ce_label_smooth_kernel(%arg0: i32, %arg1: memref<8x1xi32, #tpu.memory_space<vmem>>, %arg2: memref<8x128xf32, #tpu.memory_space<vmem>>, %arg3: memref<1x8x128xf32, #tpu.memory_space<vmem>>) attributes {dimension_semantics = [#tpu.dimension_semantics<parallel>], iteration_bounds = array<i64: 1>, scalar_prefetch = 0 : i64, scratch_operands = 0 : i64, tpu.core_type = #tpu.core_type<tc>, window_params = [{transform_indices = @transform_0, window_bounds = array<i64: 8, 1>}, {transform_indices = @transform_1, window_bounds = array<i64: 8, 128>}, {transform_indices = @transform_2, window_bounds = array<i64: 1, 8, 128>}]} {
    %c0 = arith.constant 0 : index
    %c0_0 = arith.constant 0 : index
    %0 = vector.load %arg2[%c0, %c0_0] : memref<8x128xf32, #tpu.memory_space<vmem>>, vector<8x128xf32>
    %c0_1 = arith.constant 0 : index
    %c0_2 = arith.constant 0 : index
    %1 = vector.load %arg1[%c0_1, %c0_2] : memref<8x1xi32, #tpu.memory_space<vmem>>, vector<8x1xi32>
    %2 = tpu.iota {dimensions = array<i32: 1>} : vector<8x128xi32>
    %cst = arith.constant dense<0xFF800000> : vector<8xf32>
    %3 = vector.multi_reduction <maximumf>, %0, %cst [1] : vector<8x128xf32> to vector<8xf32>
    %4 = vector.shape_cast %3 : vector<8xf32> to vector<8x1xf32>
    %5 = vector.broadcast %4 : vector<8x1xf32> to vector<8x128xf32>
    %6 = arith.subf %0, %5 : vector<8x128xf32>
    %7 = math.exp %6 : vector<8x128xf32>
    %cst_3 = arith.constant dense<0.000000e+00> : vector<8xf32>
    %8 = vector.multi_reduction <add>, %7, %cst_3 [1] : vector<8x128xf32> to vector<8xf32>
    %9 = vector.shape_cast %8 : vector<8xf32> to vector<8x1xf32>
    %10 = math.log %9 : vector<8x1xf32>
    %11 = vector.broadcast %1 : vector<8x1xi32> to vector<8x128xi32>
    %12 = arith.cmpi eq, %2, %11 : vector<8x128xi32>
    %cst_4 = arith.constant 0.000000e+00 : f32
    %13 = vector.broadcast %cst_4 : f32 to vector<8x128xf32>
    %14 = arith.select %12, %6, %13 : vector<8x128xi1>, vector<8x128xf32>
    %cst_5 = arith.constant dense<0.000000e+00> : vector<8xf32>
    %15 = vector.multi_reduction <add>, %14, %cst_5 [1] : vector<8x128xf32> to vector<8xf32>
    %16 = vector.shape_cast %15 : vector<8xf32> to vector<8x1xf32>
    %17 = arith.subf %16, %10 : vector<8x1xf32>
    %cst_6 = arith.constant dense<0.000000e+00> : vector<8xf32>
    %18 = vector.multi_reduction <add>, %6, %cst_6 [1] : vector<8x128xf32> to vector<8xf32>
    %19 = vector.shape_cast %18 : vector<8xf32> to vector<8x1xf32>
    %cst_7 = arith.constant 1.280000e+02 : f32
    %20 = vector.broadcast %cst_7 : f32 to vector<8x1xf32>
    %21 = arith.mulf %20, %10 : vector<8x1xf32>
    %22 = arith.subf %19, %21 : vector<8x1xf32>
    %cst_8 = arith.constant -1.125000e-01 : f32
    %23 = vector.broadcast %cst_8 : f32 to vector<8x1xf32>
    %24 = arith.mulf %23, %17 : vector<8x1xf32>
    %cst_9 = arith.constant -9.76562514E-5 : f32
    %25 = vector.broadcast %cst_9 : f32 to vector<8x1xf32>
    %26 = arith.mulf %25, %22 : vector<8x1xf32>
    %27 = arith.addf %24, %26 : vector<8x1xf32>
    %28 = vector.shape_cast %27 : vector<8x1xf32> to vector<1x8x1xf32>
    %cst_10 = arith.constant dense<0.000000e+00> : vector<1xf32>
    %29 = vector.multi_reduction <add>, %28, %cst_10 [1, 2] : vector<1x8x1xf32> to vector<1xf32>
    %30 = vector.shape_cast %29 : vector<1xf32> to vector<1x1x1xf32>
    %31 = vector.extract %30[0, 0, 0] : f32 from vector<1x1x1xf32>
    %32 = vector.broadcast %31 : f32 to vector<1x8x128xf32>
    %c0_11 = arith.constant 0 : index
    %c0_12 = arith.constant 0 : index
    %c0_13 = arith.constant 0 : index
    %33 = vector.load %arg3[%c0_11, %c0_12, %c0_13] : memref<1x8x128xf32, #tpu.memory_space<vmem>>, vector<1x8x128xf32>
    tpu.vector_store %arg3[%c0_11, %c0_12, %c0_13], %32 {strides = array<i32>} : memref<1x8x128xf32, #tpu.memory_space<vmem>>, vector<1x8x128xf32>,
    return
  }
  func.func @transform_0(%arg0: i32) -> (i32, i32) {
    %c0_i32 = arith.constant 0 : i32
    %c0_i32_0 = arith.constant 0 : i32
    return %arg0, %c0_i32 : i32, i32
  }
  func.func @transform_1(%arg0: i32) -> (i32, i32) {
    %c0_i32 = arith.constant 0 : i32
    %c0_i32_0 = arith.constant 0 : i32
    return %arg0, %c0_i32 : i32, i32
  }
  func.func @transform_2(%arg0: i32) -> (i32, i32, i32) {
    %c0_i32 = arith.constant 0 : i32
    %c0_i32_0 = arith.constant 0 : i32
    %c0_i32_1 = arith.constant 0 : i32
    return %arg0, %c0_i32, %c0_i32_0 : i32, i32, i32
  }
}

</mosaic_0001>

<llo_original>
// kernel: tpu_custom_call.1
$region0: #{tpu_custom_call.1}
  #allocation0 [shape = 'u32[]', space=smem, size = 0x4, offset = 0x4, fixed_abs, tag = 'smem constant byte address 0x4 - core index']
  #allocation1 [shape = 'u32[72,128]{1,0:T(1,128)}', space=vmem, size = 0x9000, scoped, tag = 'internal scratch']
  %s0 = inlined_call_operand.vmem [shape: s32[8,1], index: 0, kind: input, shape index: {}]
  %s1 = inlined_call_operand.vmem [shape: f32[8,128], index: 1, kind: input, shape index: {}]
  %s2 = inlined_call_operand.hbm [shape: f32[1,8,128], index: 2, kind: output, shape index: {}]
  %s3 = sld [smem:[#allocation0]]
  $region18: #{tpu_custom_call.1} parent=0
    _
  %s5 = ssub.s32 1, %s3
  %s6 = scalar_select 0, %s5, %s3
  $region1: #{tpu_custom_call.1} parent=0
    #allocation2 [shape = 'u8[4096]{0}', space=vmem, size = 0x1000, scoped, tag = 'output window, operand 0, single buffered']
    #allocation3 [shape = 's32[1]{0}', space=sflag, size = 0x4, scoped, tag = 'scoped memory for tpu_custom_call.1']
    %7 = vsyncpa [#allocation3], 0
    // Predicated region
    $region2: #{tpu_custom_call.1} parent=1 // pred_check
      _
    $region3: #{tpu_custom_call.1} parent=1 // pred_check_branch
      %9 = sbr.rel (0) target = $region5
    $region4: #{tpu_custom_call.1} parent=1 // pred_region
      _
    $region5: #{tpu_custom_call.1} parent=1 // pred_fallthru
      _
    // Predicated region
    $region6: #{tpu_custom_call.1} parent=1 // pred_check
      _
    $region7: #{tpu_custom_call.1} parent=1 // pred_check_branch
      %11 = sbr.rel (0) target = $region9
    $region8: #{tpu_custom_call.1} parent=1 // pred_region
      _
    $region9: #{tpu_custom_call.1} parent=1 // pred_fallthru
      _
    %v12 = vld [vmem:[%s1] sm:$0xff]
    %v13 = vld [vmem:[%s0] sm:$0xff]
    %v14 = vlaneseq
    %v15 = vand.u32 %v14, 127
    %16 = vmax.xlane.f32.xlu0 %v12
    %v17 = vpop.xlane.xlu0 %16
    %v18 = vsub.f32 %v12, %v17
    %v19 = vmul.f32 %v18, 1.442695
    %v20 = vpow.pop %v19
    %21 = vadd.xlane.f32.xlu0 %v20
    %v22 = vpop.xlane.xlu0 %21
    %v23 = vlog2.pop %v22
    %v24 = vmul.f32 %v23, 0.6931472
    %25 = vset.pattern.permute.xlu0 0
    %26 = vperm.xlu0 %25, %v13
    %v27 = vpop.permute.xlu0 %26
    %vm28 = vcmp.eq.s32.totalorder %v15, %v27
    %v29 = vsel %vm28, %v18, 0.0
    %30 = vadd.xlane.f32.xlu0 %v29
    %v31 = vpop.xlane.xlu0 %30
    %v32 = vsub.f32 %v31, %v24
    %33 = vadd.xlane.f32.xlu0 %v18
    %v34 = vpop.xlane.xlu0 %33
    %v35 = vmul.f32 %v24, 128.0
    %v36 = vsub.f32 %v34, %v35
    %v37 = vmul.f32 %v32, -0.1125
    %v38 = vmul.f32 %v36, -9.765625e-05
    %v39 = vadd.f32 %v37, %v38
    %vm40 = vcmask 7168
    %v41 = vsel %vm40, %v39, 0.0
    %42 = vadd.xlane.f32.xlu0 %v41
    %v43 = vpop.xlane.xlu0 %42
    %v44 = vrot.slane %v43, 4
    %v45 = vadd.f32 %v43, %v44
    %v46 = vrot.slane %v45, 2
    %v47 = vadd.f32 %v45, %v46
    %v48 = vrot.slane %v47, 1
    %v49 = vadd.f32 %v47, %v48
    %s50 = vtos %v49
    %v51 = vstv %s50
    %52 = vst [vmem:[#allocation2] sm:$0xff] %v51
    // Predicated region
    $region10: #{tpu_custom_call.1} parent=1 // pred_check
      _
    $region11: #{tpu_custom_call.1} parent=1 // pred_check_branch
      %54 = sbr.rel (0) target = $region13
    $region12: #{tpu_custom_call.1} parent=1 // pred_region
      %56 = vsyncadd [#allocation3], 0
      %s58 = sshll.u32 [#allocation2], 4
      %s59 = int_to_ptr.vmem [resolvable:$true] %s58
      %s60 = sshll.u32 %s2, 4
      %s61 = int_to_ptr.hbm [resolvable:$true] %s60
      %63 = dma.vmem_to_hbm [thread:$0]  %s59, 128, %s61, [#allocation3]
    $region13: #{tpu_custom_call.1} parent=1 // pred_fallthru
      _
    // Predicated region
    $region14: #{tpu_custom_call.1} parent=1 // pred_check
      _
    $region15: #{tpu_custom_call.1} parent=1 // pred_check_branch
      %65 = sbr.rel (0) target = $region17
    $region16: #{tpu_custom_call.1} parent=1 // pred_region
      %67 = dma.done [#allocation3], 128
    $region17: #{tpu_custom_call.1} parent=1 // pred_fallthru
      _
    %68 = vsyncpa [#allocation3], 1

</llo_original>
